<compile_context>
chip_gen: v7x
topology: tpu7x:2x2x1
jax: 0.10.0
libtpu: 0.0.40
codegen_flags: <defaults>
</compile_context>

<pallas_src>
import jax
import jax.numpy as jnp
from jax.experimental import pallas as pl
from jax.experimental.pallas import tpu as pltpu


def _mf_kernel(u_ref, i_ref, bu_ref, bi_ref, mean_ref, out_ref):
    # u_ref, i_ref : (Bt, D) gathered embedding rows (VMEM tiles)
    # bu_ref, bi_ref, out_ref : (1, Bt) lane-dense bias / output tiles
    # mean_ref : (1,) scalar in SMEM
    prod = u_ref[...] * i_ref[...]                       # VPU, (Bt, D) f32
    dot = jnp.sum(prod, axis=-1)                         # XLU cross-lane reduce -> (Bt,)
    out_ref[...] = dot[None, :] + bu_ref[...] + bi_ref[...] + mean_ref[0]


def mf_forward(u_id, i_id, user_emb, item_emb, user_bias, item_bias, mean,
               *, block_b=512):
    """u_id, i_id: int32 (B,).  Returns float32 (B,)."""
    B = u_id.shape[0]
    D = user_emb.shape[1]

    # --- Row gathers in the wrapper (XLA) -> kernel sees dense tiles. ---
    U = jnp.take(user_emb, u_id, axis=0).astype(jnp.float32)    # (B, D)
    I = jnp.take(item_emb, i_id, axis=0).astype(jnp.float32)    # (B, D)
    b_u = jnp.take(user_bias[:, 0], u_id).astype(jnp.float32)   # (B,)
    b_i = jnp.take(item_bias[:, 0], i_id).astype(jnp.float32)   # (B,)

    # Batch tile: lane-dense (multiple of 128), big enough to amortize grid
    # step overhead.  With D=32 f32 the double-buffered VMEM footprint is a few
    # hundred KiB even at Bt=512, far under v7x's 64 MiB / scoped 32 MiB limit.
    Bt = max(128, min(block_b, pl.next_power_of_2(B)))
    nb = pl.cdiv(B, Bt)
    Bp = nb * Bt

    if Bp != B:
        pad = Bp - B
        U = jnp.pad(U, ((0, pad), (0, 0)))
        I = jnp.pad(I, ((0, pad), (0, 0)))
        b_u = jnp.pad(b_u, (0, pad))
        b_i = jnp.pad(b_i, (0, pad))

    # Lane-dense (nb, Bt) layout for biases and output.
    b_u = b_u.reshape(nb, Bt)
    b_i = b_i.reshape(nb, Bt)
    mean = mean.astype(jnp.float32)

    grid_spec = pltpu.PrefetchScalarGridSpec(
        num_scalar_prefetch=0,
        grid=(nb,),
        in_specs=[
            pl.BlockSpec((Bt, D), lambda i: (i, 0)),    # U tile
            pl.BlockSpec((Bt, D), lambda i: (i, 0)),    # I tile
            pl.BlockSpec((1, Bt), lambda i: (i, 0)),    # b_u tile (lane-dense)
            pl.BlockSpec((1, Bt), lambda i: (i, 0)),    # b_i tile (lane-dense)
            pl.BlockSpec(memory_space=pltpu.MemorySpace.SMEM),  # mean scalar
        ],
        out_specs=pl.BlockSpec((1, Bt), lambda i: (i, 0)),
    )

    out = pl.pallas_call(
        _mf_kernel,
        out_shape=jax.ShapeDtypeStruct((nb, Bt), jnp.float32),
        grid_spec=grid_spec,
        compiler_params=pltpu.CompilerParams(
            dimension_semantics=("parallel",)),   # independent per-row work
    )(U, I, b_u, b_i, mean)

    return out.reshape(Bp)[:B]                    # (B,), matches PyTorch squeeze


if __name__ == "__main__":
    # Small, deterministic setup consistent with MF.__init__
    user_num, item_num = 50, 40
    embedding_size = 32
    batch = 8
    mean_rating = 3.5

    key = jax.random.PRNGKey(0)
    k_ue, k_ie, k_ub, k_ib, k_u, k_i = jax.random.split(key, 6)

    # Same init distributions as the PyTorch module
    user_emb = jax.random.uniform(k_ue, (user_num, embedding_size),
                                  jnp.float32, 0.0, 0.005)
    item_emb = jax.random.uniform(k_ie, (item_num, embedding_size),
                                  jnp.float32, 0.0, 0.005)
    user_bias = jax.random.uniform(k_ub, (user_num, 1),
                                   jnp.float32, -0.01, 0.01)
    item_bias = jax.random.uniform(k_ib, (item_num, 1),
                                   jnp.float32, -0.01, 0.01)
    mean = jnp.array([mean_rating], dtype=jnp.float32)

    u_id = jax.random.randint(k_u, (batch,), 0, user_num, dtype=jnp.int32)
    i_id = jax.random.randint(k_i, (batch,), 0, item_num, dtype=jnp.int32)

    out = mf_forward(u_id, i_id, user_emb, item_emb, user_bias, item_bias, mean)
    out = jax.block_until_ready(out)

    # Pure-JAX reference check (dropout == identity in eval mode)
    U = user_emb[u_id]
    I = item_emb[i_id]
    ref = (U * I).sum(axis=1) + user_bias[u_id, 0] + item_bias[i_id, 0] + mean[0]
    assert out.shape == (batch,)
    assert jnp.allclose(out, ref, atol=1e-6, rtol=1e-6)

    print("KERNEL_OK")
</pallas_src>

<mosaic_0001>
module attributes {stable_mosaic.version = 11 : i64} {
  func.func @_mf_kernel(%arg0: i32, %arg1: memref<128x32xf32, #tpu.memory_space<vmem>>, %arg2: memref<128x32xf32, #tpu.memory_space<vmem>>, %arg3: memref<1x128xf32, #tpu.memory_space<vmem>>, %arg4: memref<1x128xf32, #tpu.memory_space<vmem>>, %arg5: memref<1xf32, #tpu.memory_space<smem>>, %arg6: memref<1x128xf32, #tpu.memory_space<vmem>>) attributes {dimension_semantics = [#tpu.dimension_semantics<parallel>], iteration_bounds = array<i64: 1>, scalar_prefetch = 0 : i64, scratch_operands = 0 : i64, tpu.core_type = #tpu.core_type<tc>, window_params = [{transform_indices = @transform_0, window_bounds = array<i64: 128, 32>}, {transform_indices = @transform_1, window_bounds = array<i64: 128, 32>}, {transform_indices = @transform_2, window_bounds = array<i64: 1, 128>}, {transform_indices = @transform_3, window_bounds = array<i64: 1, 128>}, {transform_indices = @transform_4, window_bounds = array<i64: 1>}, {transform_indices = @transform_5, window_bounds = array<i64: 1, 128>}]} {
    %c0 = arith.constant 0 : index
    %c0_0 = arith.constant 0 : index
    %0 = vector.load %arg1[%c0, %c0_0] : memref<128x32xf32, #tpu.memory_space<vmem>>, vector<128x32xf32>
    %c0_1 = arith.constant 0 : index
    %c0_2 = arith.constant 0 : index
    %1 = vector.load %arg2[%c0_1, %c0_2] : memref<128x32xf32, #tpu.memory_space<vmem>>, vector<128x32xf32>
    %2 = arith.mulf %0, %1 : vector<128x32xf32>
    %cst = arith.constant dense<0.000000e+00> : vector<128xf32>
    %3 = vector.multi_reduction <add>, %2, %cst [1] : vector<128x32xf32> to vector<128xf32>
    %4 = vector.shape_cast %3 : vector<128xf32> to vector<1x128xf32>
    %c0_3 = arith.constant 0 : index
    %c0_4 = arith.constant 0 : index
    %5 = vector.load %arg3[%c0_3, %c0_4] : memref<1x128xf32, #tpu.memory_space<vmem>>, vector<1x128xf32>
    %6 = arith.addf %4, %5 : vector<1x128xf32>
    %c0_5 = arith.constant 0 : index
    %c0_6 = arith.constant 0 : index
    %7 = vector.load %arg4[%c0_5, %c0_6] : memref<1x128xf32, #tpu.memory_space<vmem>>, vector<1x128xf32>
    %8 = arith.addf %6, %7 : vector<1x128xf32>
    %c0_7 = arith.constant 0 : index
    %9 = memref.load %arg5[%c0_7] : memref<1xf32, #tpu.memory_space<smem>>
    %10 = vector.broadcast %9 : f32 to vector<1x128xf32>
    %11 = arith.addf %8, %10 : vector<1x128xf32>
    %c0_8 = arith.constant 0 : index
    %c0_9 = arith.constant 0 : index
    %12 = vector.load %arg6[%c0_8, %c0_9] : memref<1x128xf32, #tpu.memory_space<vmem>>, vector<1x128xf32>
    tpu.vector_store %arg6[%c0_8, %c0_9], %11 {strides = array<i32>} : memref<1x128xf32, #tpu.memory_space<vmem>>, vector<1x128xf32>,
    return
  }
  func.func @transform_0(%arg0: i32) -> (i32, i32) {
    %c0_i32 = arith.constant 0 : i32
    %c0_i32_0 = arith.constant 0 : i32
    return %arg0, %c0_i32 : i32, i32
  }
  func.func @transform_1(%arg0: i32) -> (i32, i32) {
    %c0_i32 = arith.constant 0 : i32
    %c0_i32_0 = arith.constant 0 : i32
    return %arg0, %c0_i32 : i32, i32
  }
  func.func @transform_2(%arg0: i32) -> (i32, i32) {
    %c0_i32 = arith.constant 0 : i32
    %c0_i32_0 = arith.constant 0 : i32
    return %arg0, %c0_i32 : i32, i32
  }
  func.func @transform_3(%arg0: i32) -> (i32, i32) {
    %c0_i32 = arith.constant 0 : i32
    %c0_i32_0 = arith.constant 0 : i32
    return %arg0, %c0_i32 : i32, i32
  }
  func.func @transform_4(%arg0: i32) -> i32 {
    %c0_i32 = arith.constant 0 : i32
    %c0_i32_0 = arith.constant 0 : i32
    return %c0_i32 : i32
  }
  func.func @transform_5(%arg0: i32) -> (i32, i32) {
    %c0_i32 = arith.constant 0 : i32
    %c0_i32_0 = arith.constant 0 : i32
    return %arg0, %c0_i32 : i32, i32
  }
}

</mosaic_0001>

<llo_original>
// kernel: tpu_custom_call.1
$region0: #{tpu_custom_call.1}
  #allocation0 [shape = 'u32[]', space=smem, size = 0x4, offset = 0x4, fixed_abs, tag = 'smem constant byte address 0x4 - core index']
  #allocation1 [shape = 'u32[144,128]{1,0:T(1,128)}', space=vmem, size = 0x12000, scoped, tag = 'internal scratch']
  #allocation2 [shape = 'f32[1]{0:T(128)S(6)}', space=smem, size = 0x200, scoped, tag = 'scoped memory for tpu_custom_call.1']
  %s0 = inlined_call_operand.vmem [shape: f32[128,32], index: 0, kind: input, shape index: {}]
  %s1 = inlined_call_operand.vmem [shape: f32[128,32], index: 1, kind: input, shape index: {}]
  %s2 = inlined_call_operand.vmem [shape: f32[1,128], index: 2, kind: input, shape index: {}]
  %s3 = inlined_call_operand.vmem [shape: f32[1,128], index: 3, kind: input, shape index: {}]
  %s4 = inlined_call_operand.<no memory space> [shape: f32[1], index: 4, kind: input, shape index: {}]
  %s5 = inlined_call_operand.hbm [shape: f32[1,128], index: 5, kind: output, shape index: {}]
  %s6 = sld [smem:[#allocation0]]
  $region30: #{tpu_custom_call.1} parent=0
    _
  %s8 = ssub.s32 1, %s6
  %s9 = scalar_select 0, %s8, %s6
  %10 = sst [smem:[#allocation2]] %s4
  $region1: #{tpu_custom_call.1} parent=0
    #allocation3 [shape = 'u8[512]{0}', space=vmem, size = 0x400, scoped, tag = 'output window, operand 0, single buffered']
    #allocation4 [shape = 's32[1]{0}', space=sflag, size = 0x4, scoped, tag = 'scoped memory for tpu_custom_call.1']
    %11 = vsyncpa [#allocation4], 0
    // Predicated region
    $region2: #{tpu_custom_call.1} parent=1 // pred_check
      _
    $region3: #{tpu_custom_call.1} parent=1 // pred_check_branch
      %13 = sbr.rel (0) target = $region5
    $region4: #{tpu_custom_call.1} parent=1 // pred_region
      _
    $region5: #{tpu_custom_call.1} parent=1 // pred_fallthru
      _
    // Predicated region
    $region6: #{tpu_custom_call.1} parent=1 // pred_check
      _
    $region7: #{tpu_custom_call.1} parent=1 // pred_check_branch
      %15 = sbr.rel (0) target = $region9
    $region8: #{tpu_custom_call.1} parent=1 // pred_region
      _
    $region9: #{tpu_custom_call.1} parent=1 // pred_fallthru
      _
    // Predicated region
    $region10: #{tpu_custom_call.1} parent=1 // pred_check
      _
    $region11: #{tpu_custom_call.1} parent=1 // pred_check_branch
      %17 = sbr.rel (0) target = $region13
    $region12: #{tpu_custom_call.1} parent=1 // pred_region
      _
    $region13: #{tpu_custom_call.1} parent=1 // pred_fallthru
      _
    // Predicated region
    $region14: #{tpu_custom_call.1} parent=1 // pred_check
      _
    $region15: #{tpu_custom_call.1} parent=1 // pred_check_branch
      %19 = sbr.rel (0) target = $region17
    $region16: #{tpu_custom_call.1} parent=1 // pred_region
      _
    $region17: #{tpu_custom_call.1} parent=1 // pred_fallthru
      _
    // Predicated region
    $region18: #{tpu_custom_call.1} parent=1 // pred_check
      _
    $region19: #{tpu_custom_call.1} parent=1 // pred_check_branch
      %21 = sbr.rel (0) target = $region21
    $region20: #{tpu_custom_call.1} parent=1 // pred_region
      _
    $region21: #{tpu_custom_call.1} parent=1 // pred_fallthru
      _
    %v22 = vld [vmem:[%s0] sm:$0xff]
    %v23 = vld [vmem:[%s0 + $0x8] sm:$0xff]
    %v24 = vld [vmem:[%s0 + $0x10] sm:$0xff]
    %v25 = vld [vmem:[%s0 + $0x18] sm:$0xff]
    %v26 = vld [vmem:[%s0 + $0x20] sm:$0xff]
    %v27 = vld [vmem:[%s0 + $0x28] sm:$0xff]
    %v28 = vld [vmem:[%s0 + $0x30] sm:$0xff]
    %v29 = vld [vmem:[%s0 + $0x38] sm:$0xff]
    %v30 = vld [vmem:[%s0 + $0x40] sm:$0xff]
    %v31 = vld [vmem:[%s0 + $0x48] sm:$0xff]
    %v32 = vld [vmem:[%s0 + $0x50] sm:$0xff]
    %v33 = vld [vmem:[%s0 + $0x58] sm:$0xff]
    %v34 = vld [vmem:[%s0 + $0x60] sm:$0xff]
    %v35 = vld [vmem:[%s0 + $0x68] sm:$0xff]
    %v36 = vld [vmem:[%s0 + $0x70] sm:$0xff]
    %v37 = vld [vmem:[%s0 + $0x78] sm:$0xff]
    %v38 = vld [vmem:[%s1] sm:$0xff]
    %v39 = vld [vmem:[%s1 + $0x8] sm:$0xff]
    %v40 = vld [vmem:[%s1 + $0x10] sm:$0xff]
    %v41 = vld [vmem:[%s1 + $0x18] sm:$0xff]
    %v42 = vld [vmem:[%s1 + $0x20] sm:$0xff]
    %v43 = vld [vmem:[%s1 + $0x28] sm:$0xff]
    %v44 = vld [vmem:[%s1 + $0x30] sm:$0xff]
    %v45 = vld [vmem:[%s1 + $0x38] sm:$0xff]
    %v46 = vld [vmem:[%s1 + $0x40] sm:$0xff]
    %v47 = vld [vmem:[%s1 + $0x48] sm:$0xff]
    %v48 = vld [vmem:[%s1 + $0x50] sm:$0xff]
    %v49 = vld [vmem:[%s1 + $0x58] sm:$0xff]
    %v50 = vld [vmem:[%s1 + $0x60] sm:$0xff]
    %v51 = vld [vmem:[%s1 + $0x68] sm:$0xff]
    %v52 = vld [vmem:[%s1 + $0x70] sm:$0xff]
    %v53 = vld [vmem:[%s1 + $0x78] sm:$0xff]
    %v54 = vmul.f32 %v22, %v38
    %v55 = vmul.f32 %v23, %v39
    %v56 = vmul.f32 %v24, %v40
    %v57 = vmul.f32 %v25, %v41
    %v58 = vmul.f32 %v26, %v42
    %v59 = vmul.f32 %v27, %v43
    %v60 = vmul.f32 %v28, %v44
    %v61 = vmul.f32 %v29, %v45
    %v62 = vmul.f32 %v30, %v46
    %v63 = vmul.f32 %v31, %v47
    %v64 = vmul.f32 %v32, %v48
    %v65 = vmul.f32 %v33, %v49
    %v66 = vmul.f32 %v34, %v50
    %v67 = vmul.f32 %v35, %v51
    %v68 = vmul.f32 %v36, %v52
    %v69 = vmul.f32 %v37, %v53
    %vm70 = vcmask 261120
    %v71 = vsel %vm70, %v54, 0.0
    %72 = vadd.xlane.f32.xlu0 %v71
    %v73 = vpop.xlane.xlu0 %72
    %v74 = vsel %vm70, %v55, 0.0
    %75 = vadd.xlane.f32.xlu0 %v74
    %v76 = vpop.xlane.xlu0 %75
    %v77 = vsel %vm70, %v56, 0.0
    %78 = vadd.xlane.f32.xlu0 %v77
    %v79 = vpop.xlane.xlu0 %78
    %v80 = vsel %vm70, %v57, 0.0
    %81 = vadd.xlane.f32.xlu0 %v80
    %v82 = vpop.xlane.xlu0 %81
    %v83 = vsel %vm70, %v58, 0.0
    %84 = vadd.xlane.f32.xlu0 %v83
    %v85 = vpop.xlane.xlu0 %84
    %v86 = vsel %vm70, %v59, 0.0
    %87 = vadd.xlane.f32.xlu0 %v86
    %v88 = vpop.xlane.xlu0 %87
    %v89 = vsel %vm70, %v60, 0.0
    %90 = vadd.xlane.f32.xlu0 %v89
    %v91 = vpop.xlane.xlu0 %90
    %v92 = vsel %vm70, %v61, 0.0
    %93 = vadd.xlane.f32.xlu0 %v92
    %v94 = vpop.xlane.xlu0 %93
    %v95 = vsel %vm70, %v62, 0.0
    %96 = vadd.xlane.f32.xlu0 %v95
    %v97 = vpop.xlane.xlu0 %96
    %v98 = vsel %vm70, %v63, 0.0
    %99 = vadd.xlane.f32.xlu0 %v98
    %v100 = vpop.xlane.xlu0 %99
    %v101 = vsel %vm70, %v64, 0.0
    %102 = vadd.xlane.f32.xlu0 %v101
    %v103 = vpop.xlane.xlu0 %102
    %v104 = vsel %vm70, %v65, 0.0
    %105 = vadd.xlane.f32.xlu0 %v104
    %v106 = vpop.xlane.xlu0 %105
    %v107 = vsel %vm70, %v66, 0.0
    %108 = vadd.xlane.f32.xlu0 %v107
    %v109 = vpop.xlane.xlu0 %108
    %v110 = vsel %vm70, %v67, 0.0
    %111 = vadd.xlane.f32.xlu0 %v110
    %v112 = vpop.xlane.xlu0 %111
    %v113 = vsel %vm70, %v68, 0.0
    %114 = vadd.xlane.f32.xlu0 %v113
    %v115 = vpop.xlane.xlu0 %114
    %v116 = vsel %vm70, %v69, 0.0
    %117 = vadd.xlane.f32.xlu0 %v116
    %v118 = vpop.xlane.xlu0 %117
    %v119 = vld [vmem:[%s2] sm:$0x1]
    %v121 = vlaneseq
    %v122 = vshrl.u32 %v121, 7
    %v123 = vsub.s32 0, %v122
    %v124 = vrot.slane %v119, %v123
    %126 = vbcast.lane.b32.xlu0 %v124, 256
    %v127 = vpop.permute.xlu0 %126
    %s129 = sor.u32 256, 8
    %130 = vbcast.lane.b32.xlu0 %v124, %s129
    %v131 = vpop.permute.xlu0 %130
    %s133 = sor.u32 256, 16
    %134 = vbcast.lane.b32.xlu0 %v124, %s133
    %v135 = vpop.permute.xlu0 %134
    %s137 = sor.u32 256, 24
    %138 = vbcast.lane.b32.xlu0 %v124, %s137
    %v139 = vpop.permute.xlu0 %138
    %s141 = sor.u32 256, 32
    %142 = vbcast.lane.b32.xlu0 %v124, %s141
    %v143 = vpop.permute.xlu0 %142
    %s145 = sor.u32 256, 40
    %146 = vbcast.lane.b32.xlu0 %v124, %s145
    %v147 = vpop.permute.xlu0 %146
    %s149 = sor.u32 256, 48
    %150 = vbcast.lane.b32.xlu0 %v124, %s149
    %v151 = vpop.permute.xlu0 %150
    %s153 = sor.u32 256, 56
    %154 = vbcast.lane.b32.xlu0 %v124, %s153
    %v155 = vpop.permute.xlu0 %154
    %s157 = sor.u32 256, 64
    %158 = vbcast.lane.b32.xlu0 %v124, %s157
    %v159 = vpop.permute.xlu0 %158
    %s161 = sor.u32 256, 72
    %162 = vbcast.lane.b32.xlu0 %v124, %s161
    %v163 = vpop.permute.xlu0 %162
    %s165 = sor.u32 256, 80
    %166 = vbcast.lane.b32.xlu0 %v124, %s165
    %v167 = vpop.permute.xlu0 %166
    %s169 = sor.u32 256, 88
    %170 = vbcast.lane.b32.xlu0 %v124, %s169
    %v171 = vpop.permute.xlu0 %170
    %s173 = sor.u32 256, 96
    %174 = vbcast.lane.b32.xlu0 %v124, %s173
    %v175 = vpop.permute.xlu0 %174
    %s177 = sor.u32 256, 104
    %178 = vbcast.lane.b32.xlu0 %v124, %s177
    %v179 = vpop.permute.xlu0 %178
    %s181 = sor.u32 256, 112
    %182 = vbcast.lane.b32.xlu0 %v124, %s181
    %v183 = vpop.permute.xlu0 %182
    %s185 = sor.u32 256, 120
    %186 = vbcast.lane.b32.xlu0 %v124, %s185
    %v187 = vpop.permute.xlu0 %186
    %v204 = vadd.f32 %v73, %v127
    %v205 = vadd.f32 %v76, %v131
    %v206 = vadd.f32 %v79, %v135
    %v207 = vadd.f32 %v82, %v139
    %v208 = vadd.f32 %v85, %v143
    %v209 = vadd.f32 %v88, %v147
    %v210 = vadd.f32 %v91, %v151
    %v211 = vadd.f32 %v94, %v155
    %v212 = vadd.f32 %v97, %v159
    %v213 = vadd.f32 %v100, %v163
    %v214 = vadd.f32 %v103, %v167
    %v215 = vadd.f32 %v106, %v171
    %v216 = vadd.f32 %v109, %v175
    %v217 = vadd.f32 %v112, %v179
    %v218 = vadd.f32 %v115, %v183
    %v219 = vadd.f32 %v118, %v187
    %v220 = vld [vmem:[%s3] sm:$0x1]
    %v222 = vlaneseq
    %v223 = vshrl.u32 %v222, 7
    %v224 = vsub.s32 0, %v223
    %v225 = vrot.slane %v220, %v224
    %227 = vbcast.lane.b32.xlu0 %v225, 256
    %v228 = vpop.permute.xlu0 %227
    %s230 = sor.u32 256, 8
    %231 = vbcast.lane.b32.xlu0 %v225, %s230
    %v232 = vpop.permute.xlu0 %231
    %s234 = sor.u32 256, 16
    %235 = vbcast.lane.b32.xlu0 %v225, %s234
    %v236 = vpop.permute.xlu0 %235
    %s238 = sor.u32 256, 24
    %239 = vbcast.lane.b32.xlu0 %v225, %s238
    %v240 = vpop.permute.xlu0 %239
    %s242 = sor.u32 256, 32
    %243 = vbcast.lane.b32.xlu0 %v225, %s242
    %v244 = vpop.permute.xlu0 %243
    %s246 = sor.u32 256, 40
    %247 = vbcast.lane.b32.xlu0 %v225, %s246
    %v248 = vpop.permute.xlu0 %247
    %s250 = sor.u32 256, 48
    %251 = vbcast.lane.b32.xlu0 %v225, %s250
    %v252 = vpop.permute.xlu0 %251
    %s254 = sor.u32 256, 56
    %255 = vbcast.lane.b32.xlu0 %v225, %s254
    %v256 = vpop.permute.xlu0 %255
    %s258 = sor.u32 256, 64
    %259 = vbcast.lane.b32.xlu0 %v225, %s258
    %v260 = vpop.permute.xlu0 %259
    %s262 = sor.u32 256, 72
    %263 = vbcast.lane.b32.xlu0 %v225, %s262
    %v264 = vpop.permute.xlu0 %263
    %s266 = sor.u32 256, 80
    %267 = vbcast.lane.b32.xlu0 %v225, %s266
    %v268 = vpop.permute.xlu0 %267
    %s270 = sor.u32 256, 88
    %271 = vbcast.lane.b32.xlu0 %v225, %s270
    %v272 = vpop.permute.xlu0 %271
    %s274 = sor.u32 256, 96
    %275 = vbcast.lane.b32.xlu0 %v225, %s274
    %v276 = vpop.permute.xlu0 %275
    %s278 = sor.u32 256, 104
    %279 = vbcast.lane.b32.xlu0 %v225, %s278
    %v280 = vpop.permute.xlu0 %279
    %s282 = sor.u32 256, 112
    %283 = vbcast.lane.b32.xlu0 %v225, %s282
    %v284 = vpop.permute.xlu0 %283
    %s286 = sor.u32 256, 120
    %287 = vbcast.lane.b32.xlu0 %v225, %s286
    %v288 = vpop.permute.xlu0 %287
    %v305 = vadd.f32 %v204, %v228
    %v306 = vadd.f32 %v205, %v232
    %v307 = vadd.f32 %v206, %v236
    %v308 = vadd.f32 %v207, %v240
    %v309 = vadd.f32 %v208, %v244
    %v310 = vadd.f32 %v209, %v248
    %v311 = vadd.f32 %v210, %v252
    %v312 = vadd.f32 %v211, %v256
    %v313 = vadd.f32 %v212, %v260
    %v314 = vadd.f32 %v213, %v264
    %v315 = vadd.f32 %v214, %v268
    %v316 = vadd.f32 %v215, %v272
    %v317 = vadd.f32 %v216, %v276
    %v318 = vadd.f32 %v217, %v280
    %v319 = vadd.f32 %v218, %v284
    %v320 = vadd.f32 %v219, %v288
    %s321 = sld [smem:[#allocation2]]
    %v322 = vstv %s321
    %v323 = vadd.f32 %v305, %v322
    %v324 = vadd.f32 %v306, %v322
    %v325 = vadd.f32 %v307, %v322
    %v326 = vadd.f32 %v308, %v322
    %v327 = vadd.f32 %v309, %v322
    %v328 = vadd.f32 %v310, %v322
    %v329 = vadd.f32 %v311, %v322
    %v330 = vadd.f32 %v312, %v322
    %v331 = vadd.f32 %v313, %v322
    %v332 = vadd.f32 %v314, %v322
    %v333 = vadd.f32 %v315, %v322
    %v334 = vadd.f32 %v316, %v322
    %v335 = vadd.f32 %v317, %v322
    %v336 = vadd.f32 %v318, %v322
    %v337 = vadd.f32 %v319, %v322
    %v338 = vadd.f32 %v320, %v322
    %355 = vset.pattern.permute.xlu0 0
    %356 = vperm.xlu0 %355, %v323
    %v357 = vpop.permute.xlu0 %356
    %358 = vset.pattern.permute.xlu0 0
    %359 = vperm.xlu0 %358, %v324
    %v360 = vpop.permute.xlu0 %359
    %361 = vset.pattern.permute.xlu0 0
    %362 = vperm.xlu0 %361, %v325
    %v363 = vpop.permute.xlu0 %362
    %364 = vset.pattern.permute.xlu0 0
    %365 = vperm.xlu0 %364, %v326
    %v366 = vpop.permute.xlu0 %365
    %367 = vset.pattern.permute.xlu0 0
    %368 = vperm.xlu0 %367, %v327
    %v369 = vpop.permute.xlu0 %368
    %370 = vset.pattern.permute.xlu0 0
    %371 = vperm.xlu0 %370, %v328
    %v372 = vpop.permute.xlu0 %371
    %373 = vset.pattern.permute.xlu0 0
    %374 = vperm.xlu0 %373, %v329
    %v375 = vpop.permute.xlu0 %374
    %376 = vset.pattern.permute.xlu0 0
    %377 = vperm.xlu0 %376, %v330
    %v378 = vpop.permute.xlu0 %377
    %379 = vset.pattern.permute.xlu0 0
    %380 = vperm.xlu0 %379, %v331
    %v381 = vpop.permute.xlu0 %380
    %382 = vset.pattern.permute.xlu0 0
    %383 = vperm.xlu0 %382, %v332
    %v384 = vpop.permute.xlu0 %383
    %385 = vset.pattern.permute.xlu0 0
    %386 = vperm.xlu0 %385, %v333
    %v387 = vpop.permute.xlu0 %386
    %388 = vset.pattern.permute.xlu0 0
    %389 = vperm.xlu0 %388, %v334
    %v390 = vpop.permute.xlu0 %389
    %391 = vset.pattern.permute.xlu0 0
    %392 = vperm.xlu0 %391, %v335
    %v393 = vpop.permute.xlu0 %392
    %394 = vset.pattern.permute.xlu0 0
    %395 = vperm.xlu0 %394, %v336
    %v396 = vpop.permute.xlu0 %395
    %397 = vset.pattern.permute.xlu0 0
    %398 = vperm.xlu0 %397, %v337
    %v399 = vpop.permute.xlu0 %398
    %400 = vset.pattern.permute.xlu0 0
    %401 = vperm.xlu0 %400, %v338
    %v402 = vpop.permute.xlu0 %401
    %v403 = vlaneseq
    %v404 = vand.u32 %v403, 127
    %v405 = vlaneseq
    %v406 = vshrl.u32 %v405, 7
    %v407 = vsub.s32 %v404, %v406
    %v408 = vrot.slane %v357, %v407
    %v409 = vadd.s32 %v404, 4294967288
    %v410 = vlaneseq
    %v411 = vshrl.u32 %v410, 7
    %v412 = vsub.s32 %v409, %v411
    %v413 = vrot.slane %v360, %v412
    %vm414 = vcmask 130112
    %v415 = vsel %vm414, %v413, %v408
    %v416 = vadd.s32 %v404, 4294967280
    %v417 = vlaneseq
    %v418 = vshrl.u32 %v417, 7
    %v419 = vsub.s32 %v416, %v418
    %v420 = vrot.slane %v363, %v419
    %vm421 = vcmask 195712
    %v422 = vsel %vm421, %v420, %v415
    %v423 = vadd.s32 %v404, 4294967272
    %v424 = vlaneseq
    %v425 = vshrl.u32 %v424, 7
    %v426 = vsub.s32 %v423, %v425
    %v427 = vrot.slane %v366, %v426
    %vm428 = vcmask 261312
    %v429 = vsel %vm428, %v427, %v422
    %v430 = vadd.s32 %v404, 4294967264
    %v431 = vlaneseq
    %v432 = vshrl.u32 %v431, 7
    %v433 = vsub.s32 %v430, %v432
    %v434 = vrot.slane %v369, %v433
    %vm435 = vcmask 326912
    %v436 = vsel %vm435, %v434, %v429
    %v437 = vadd.s32 %v404, 4294967256
    %v438 = vlaneseq
    %v439 = vshrl.u32 %v438, 7
    %v440 = vsub.s32 %v437, %v439
    %v441 = vrot.slane %v372, %v440
    %vm442 = vcmask 392512
    %v443 = vsel %vm442, %v441, %v436
    %v444 = vadd.s32 %v404, 4294967248
    %v445 = vlaneseq
    %v446 = vshrl.u32 %v445, 7
    %v447 = vsub.s32 %v444, %v446
    %v448 = vrot.slane %v375, %v447
    %vm449 = vcmask 458112
    %v450 = vsel %vm449, %v448, %v443
    %v451 = vadd.s32 %v404, 4294967240
    %v452 = vlaneseq
    %v453 = vshrl.u32 %v452, 7
    %v454 = vsub.s32 %v451, %v453
    %v455 = vrot.slane %v378, %v454
    %vm456 = vcmask 523712
    %v457 = vsel %vm456, %v455, %v450
    %v458 = vadd.s32 %v404, 4294967232
    %v459 = vlaneseq
    %v460 = vshrl.u32 %v459, 7
    %v461 = vsub.s32 %v458, %v460
    %v462 = vrot.slane %v381, %v461
    %vm463 = vcmask 589312
    %v464 = vsel %vm463, %v462, %v457
    %v465 = vadd.s32 %v404, 4294967224
    %v466 = vlaneseq
    %v467 = vshrl.u32 %v466, 7
    %v468 = vsub.s32 %v465, %v467
    %v469 = vrot.slane %v384, %v468
    %vm470 = vcmask 654912
    %v471 = vsel %vm470, %v469, %v464
    %v472 = vadd.s32 %v404, 4294967216
    %v473 = vlaneseq
    %v474 = vshrl.u32 %v473, 7
    %v475 = vsub.s32 %v472, %v474
    %v476 = vrot.slane %v387, %v475
    %vm477 = vcmask 720512
    %v478 = vsel %vm477, %v476, %v471
    %v479 = vadd.s32 %v404, 4294967208
    %v480 = vlaneseq
    %v481 = vshrl.u32 %v480, 7
    %v482 = vsub.s32 %v479, %v481
    %v483 = vrot.slane %v390, %v482
    %vm484 = vcmask 786112
    %v485 = vsel %vm484, %v483, %v478
    %v486 = vadd.s32 %v404, 4294967200
    %v487 = vlaneseq
    %v488 = vshrl.u32 %v487, 7
    %v489 = vsub.s32 %v486, %v488
    %v490 = vrot.slane %v393, %v489
    %vm491 = vcmask 851712
    %v492 = vsel %vm491, %v490, %v485
    %v493 = vadd.s32 %v404, 4294967192
    %v494 = vlaneseq
    %v495 = vshrl.u32 %v494, 7
    %v496 = vsub.s32 %v493, %v495
    %v497 = vrot.slane %v396, %v496
    %vm498 = vcmask 917312
    %v499 = vsel %vm498, %v497, %v492
    %v500 = vadd.s32 %v404, 4294967184
    %v501 = vlaneseq
    %v502 = vshrl.u32 %v501, 7
    %v503 = vsub.s32 %v500, %v502
    %v504 = vrot.slane %v399, %v503
    %vm505 = vcmask 982912
    %v506 = vsel %vm505, %v504, %v499
    %v507 = vadd.s32 %v404, 4294967176
    %v508 = vlaneseq
    %v509 = vshrl.u32 %v508, 7
    %v510 = vsub.s32 %v507, %v509
    %v511 = vrot.slane %v402, %v510
    %vm512 = vcmask 1048512
    %v513 = vsel %vm512, %v511, %v506
    %515 = vst [vmem:[#allocation3] sm:$0x1] %v513
    // Predicated region
    $region22: #{tpu_custom_call.1} parent=1 // pred_check
      _
    $region23: #{tpu_custom_call.1} parent=1 // pred_check_branch
      %517 = sbr.rel (0) target = $region25
    $region24: #{tpu_custom_call.1} parent=1 // pred_region
      %s519 = ssub.s32 16, 16
      %520 = vsyncadd [#allocation4], %s519
      %s522 = sshll.u32 [#allocation3], 4
      %s523 = int_to_ptr.vmem [resolvable:$true] %s522
      %525 = dma.vmem_to_hbm [thread:$0]  %s523, 16, %s5, [#allocation4]
    $region25: #{tpu_custom_call.1} parent=1 // pred_fallthru
      _
    // Predicated region
    $region26: #{tpu_custom_call.1} parent=1 // pred_check
      _
    $region27: #{tpu_custom_call.1} parent=1 // pred_check_branch
      %527 = sbr.rel (0) target = $region29
    $region28: #{tpu_custom_call.1} parent=1 // pred_region
      %528 = dma.done [#allocation4], 16
    $region29: #{tpu_custom_call.1} parent=1 // pred_fallthru
      _
    %529 = vsyncpa [#allocation4], 1

</llo_original>
